<compile_context>
chip_gen: v7x
topology: tpu7x:2x2x1
jax: 0.10.0
libtpu: 0.0.40
codegen_flags: <defaults>
</compile_context>

<pallas_src>
import functools

import jax
import jax.numpy as jnp
from jax.experimental import pallas as pl
from jax.experimental.pallas import tpu as pltpu

LANE = 128        # lane width of a vreg
SUBLANE = 8       # sublane count of a vreg (f32)
NEG_BIG = -1e30   # logit value for padded output lanes (exp -> exactly 0 in f32)


def policy_kernel(x_ref, w_ref, b_ref, o_ref):
    """One batch tile: logits = x @ w + b (w already [K, OUT_PAD]), then stable softmax."""
    x = x_ref[...].astype(jnp.float32)        # (bm, K)
    w = w_ref[...]                            # (K, OUT_PAD) f32, pre-transposed at prep time
    b = b_ref[...]                            # (1, OUT_PAD), padded lanes are -1e30

    logits = jnp.dot(x, w, preferred_element_type=jnp.float32) + b   # (bm, OUT_PAD)

    m = jnp.max(logits, axis=-1, keepdims=True)
    e = jnp.exp(logits - m)                   # padded lanes: exp(-1e30 - m) == 0
    denom = jnp.sum(e, axis=-1, keepdims=True)
    # Exact reciprocal: denom is only (bm, 1), so this costs ~nothing and keeps rows
    # summing to 1 at full f32 precision (review correctness concern).
    probs = e * (1.0 / denom)
    o_ref[...] = probs.astype(o_ref.dtype)    # lane-dense, unmasked full-vreg store


def prepare_params(w, b):
    """One-time parameter prep (amortized across every forward call).

    w: [output_dim, input_dim] (PyTorch nn.Linear layout), b: [output_dim].
    Returns:
      w_t: [input_dim, out_pad]  -- transposed once here, lane-padded with zeros.
      b_p: [1, out_pad]          -- padded lanes are NEG_BIG so they softmax to 0.
    """
    output_dim, input_dim = w.shape
    out_pad = pl.cdiv(output_dim, LANE) * LANE
    w_t = jnp.zeros((input_dim, out_pad), jnp.float32).at[:, :output_dim].set(
        jnp.asarray(w, jnp.float32).T)
    b_p = jnp.full((1, out_pad), NEG_BIG, jnp.float32).at[0, :output_dim].set(
        jnp.asarray(b, jnp.float32))
    return w_t, b_p


def _pick_bm(B):
    """Batch-tile rows. HBM/grid-overhead bound -> prefer 512-1024 row tiles (multiples
    of 256 so M feeds the 256-wide v6e/v7x MXU), but keep >= 2 grid steps when possible
    so both v7x TensorCores get work."""
    if B >= 2048:
        return 1024
    if B >= 1024:
        return 512
    if B >= 512:
        return 256
    # Small batch: single tile, rounded up to a sublane multiple; the trailing partial
    # block is masked by Pallas (no wrapper pad / row-slice passes).
    return max(SUBLANE, pl.cdiv(B, SUBLANE) * SUBLANE)


@functools.partial(jax.jit, static_argnames=("output_dim", "return_padded"))
def policy_network_forward(x, w_t, b_p, *, output_dim, return_padded=False):
    """x: [B, input_dim]; (w_t, b_p) from prepare_params().

    Returns [B, output_dim] action probabilities, or the lane-padded [B, out_pad]
    array (padded lanes are exactly 0) if return_padded=True.
    """
    B, input_dim = x.shape
    K, out_pad = w_t.shape
    assert K == input_dim, "prepare_params() input_dim mismatch"

    bm = _pick_bm(B)
    grid = (pl.cdiv(B, bm),)

    # VMEM budgeting: double-buffered x/out tiles + resident weight/bias, with slack.
    resident_bytes = (K * out_pad + out_pad) * 4
    tile_bytes = bm * (K + out_pad) * 4
    vmem_limit = min(64 << 20, max(2 * tile_bytes + 2 * resident_bytes + (1 << 20),
                                   16 << 20))

    # Constant-index_map blocks never revolve; single-buffer them once the resident
    # weight is large enough for the duplicate buffer to matter (v7x: 64 MiB VMEM).
    # For weights too large to stay resident at all, the next step would be an
    # out_pad grid axis with an online-softmax accumulator (not needed at these sizes).
    resident_mode = pl.Buffered(1) if resident_bytes > (8 << 20) else None

    out = pl.pallas_call(
        policy_kernel,
        out_shape=jax.ShapeDtypeStruct((B, out_pad), jnp.float32),
        grid=grid,
        in_specs=[
            pl.BlockSpec((bm, K), lambda i: (i, 0)),                    # batch tile of x
            pl.BlockSpec((K, out_pad), lambda i: (0, 0),
                         pipeline_mode=resident_mode),                  # resident weight
            pl.BlockSpec((1, out_pad), lambda i: (0, 0),
                         pipeline_mode=resident_mode),                  # resident bias
        ],
        out_specs=pl.BlockSpec((bm, out_pad), lambda i: (i, 0)),
        compiler_params=pltpu.CompilerParams(
            # Batch rows are independent -> both TensorCores on v7x; neutral on v5e/v6e.
            dimension_semantics=("parallel",),
            vmem_limit_bytes=vmem_limit),
    )(x, w_t, b_p)

    if return_padded:
        return out                      # (B, out_pad); padded lanes are exactly 0
    return out[:, :output_dim]          # (B, output_dim) — matches the nn.Module output


if __name__ == "__main__":
    input_dim = 4
    output_dim = 3
    B = 2

    key = jax.random.PRNGKey(0)
    kx, kw, kb = jax.random.split(key, 3)

    # Deterministic parameter init mimicking nn.Linear's U(-1/sqrt(in), 1/sqrt(in)).
    bound = 1.0 / (input_dim ** 0.5)
    w = jax.random.uniform(kw, (output_dim, input_dim), jnp.float32, -bound, bound)
    b = jax.random.uniform(kb, (output_dim,), jnp.float32, -bound, bound)

    # One-time prep: transpose + lane-pad the weight, pad the bias.
    w_t, b_p = prepare_params(w, b)

    # Example inputs: first row matches `features = [1, 2, 3, 4]` from the reference script.
    x = jnp.stack([
        jnp.array([1.0, 2.0, 3.0, 4.0], jnp.float32),
        jax.random.normal(kx, (input_dim,), jnp.float32),
    ])

    probs = policy_network_forward(x, w_t, b_p, output_dim=output_dim)
    probs = jax.block_until_ready(probs)

    # Reference check in plain JAX.
    ref = jax.nn.softmax(x @ w.T + b, axis=-1)
    assert probs.shape == (B, output_dim), probs.shape
    assert jnp.allclose(probs, ref, atol=1e-5), (probs, ref)
    assert jnp.allclose(jnp.sum(probs, axis=-1), 1.0, atol=1e-5)

    print("KERNEL_OK")
</pallas_src>

<mosaic_0001>
module attributes {stable_mosaic.version = 11 : i64} {
  func.func @policy_kernel(%arg0: i32, %arg1: memref<8x4xf32, #tpu.memory_space<vmem>>, %arg2: memref<4x128xf32, #tpu.memory_space<vmem>>, %arg3: memref<1x128xf32, #tpu.memory_space<vmem>>, %arg4: memref<8x128xf32, #tpu.memory_space<vmem>>) attributes {dimension_semantics = [#tpu.dimension_semantics<parallel>], iteration_bounds = array<i64: 1>, scalar_prefetch = 0 : i64, scratch_operands = 0 : i64, tpu.core_type = #tpu.core_type<tc>, window_params = [{transform_indices = @transform_0, window_bounds = array<i64: 8, 4>}, {pipeline_mode = #tpu.pipeline_mode<synchronous>, transform_indices = @transform_1, window_bounds = array<i64: 4, 128>}, {pipeline_mode = #tpu.pipeline_mode<synchronous>, transform_indices = @transform_2, window_bounds = array<i64: 1, 128>}, {transform_indices = @transform_3, window_bounds = array<i64: 8, 128>}]} {
    %c0 = arith.constant 0 : index
    %c0_0 = arith.constant 0 : index
    %0 = vector.load %arg1[%c0, %c0_0] : memref<8x4xf32, #tpu.memory_space<vmem>>, vector<8x4xf32>
    %c0_1 = arith.constant 0 : index
    %c0_2 = arith.constant 0 : index
    %1 = vector.load %arg2[%c0_1, %c0_2] : memref<4x128xf32, #tpu.memory_space<vmem>>, vector<4x128xf32>
    %c0_3 = arith.constant 0 : index
    %c0_4 = arith.constant 0 : index
    %2 = vector.load %arg3[%c0_3, %c0_4] : memref<1x128xf32, #tpu.memory_space<vmem>>, vector<1x128xf32>
    %cst = arith.constant dense<0.000000e+00> : vector<8x128xf32>
    %3 = tpu.matmul %0, %1, %cst {dimension_numbers = #tpu.dot_dimension_numbers<[1], [0], [0], [1], [0, 0, 1, 1], [], []>} : vector<8x4xf32>, vector<4x128xf32>, vector<8x128xf32> -> vector<8x128xf32>
    %4 = vector.broadcast %2 : vector<1x128xf32> to vector<8x128xf32>
    %5 = arith.addf %3, %4 : vector<8x128xf32>
    %cst_5 = arith.constant dense<0xFF800000> : vector<8xf32>
    %6 = vector.multi_reduction <maximumf>, %5, %cst_5 [1] : vector<8x128xf32> to vector<8xf32>
    %7 = vector.shape_cast %6 : vector<8xf32> to vector<8x1xf32>
    %8 = vector.broadcast %7 : vector<8x1xf32> to vector<8x128xf32>
    %9 = arith.subf %5, %8 : vector<8x128xf32>
    %10 = math.exp %9 : vector<8x128xf32>
    %cst_6 = arith.constant dense<0.000000e+00> : vector<8xf32>
    %11 = vector.multi_reduction <add>, %10, %cst_6 [1] : vector<8x128xf32> to vector<8xf32>
    %12 = vector.shape_cast %11 : vector<8xf32> to vector<8x1xf32>
    %cst_7 = arith.constant 1.000000e+00 : f32
    %13 = vector.broadcast %cst_7 : f32 to vector<8x1xf32>
    %14 = arith.divf %13, %12 : vector<8x1xf32>
    %15 = vector.broadcast %14 : vector<8x1xf32> to vector<8x128xf32>
    %16 = arith.mulf %10, %15 : vector<8x128xf32>
    %c0_8 = arith.constant 0 : index
    %c0_9 = arith.constant 0 : index
    %17 = vector.load %arg4[%c0_8, %c0_9] : memref<8x128xf32, #tpu.memory_space<vmem>>, vector<8x128xf32>
    tpu.vector_store %arg4[%c0_8, %c0_9], %16 {strides = array<i32>} : memref<8x128xf32, #tpu.memory_space<vmem>>, vector<8x128xf32>,
    return
  }
  func.func @transform_0(%arg0: i32) -> (i32, i32) {
    %c0_i32 = arith.constant 0 : i32
    %c0_i32_0 = arith.constant 0 : i32
    return %arg0, %c0_i32 : i32, i32
  }
  func.func @transform_1(%arg0: i32) -> (i32, i32) {
    %c0_i32 = arith.constant 0 : i32
    %c0_i32_0 = arith.constant 0 : i32
    %c0_i32_1 = arith.constant 0 : i32
    return %c0_i32, %c0_i32_0 : i32, i32
  }
  func.func @transform_2(%arg0: i32) -> (i32, i32) {
    %c0_i32 = arith.constant 0 : i32
    %c0_i32_0 = arith.constant 0 : i32
    %c0_i32_1 = arith.constant 0 : i32
    return %c0_i32, %c0_i32_0 : i32, i32
  }
  func.func @transform_3(%arg0: i32) -> (i32, i32) {
    %c0_i32 = arith.constant 0 : i32
    %c0_i32_0 = arith.constant 0 : i32
    return %arg0, %c0_i32 : i32, i32
  }
}

</mosaic_0001>

<llo_original>
// kernel: policy_network_forward.1
$region0: #{policy_network_forward.1}
  #allocation0 [shape = 'u32[]', space=smem, size = 0x4, offset = 0x4, fixed_abs, tag = 'smem constant byte address 0x4 - core index']
  #allocation1 [shape = 'u32[144,128]{1,0:T(1,128)}', space=vmem, size = 0x12000, scoped, tag = 'internal scratch']
  %s0 = inlined_call_operand.hbm [shape: f32[2,4], index: 0, kind: input, shape index: {}]
  %s1 = inlined_call_operand.hbm [shape: f32[4,128], index: 1, kind: input, shape index: {}]
  %s2 = inlined_call_operand.vmem [shape: f32[1,128], index: 2, kind: input, shape index: {}]
  %s3 = inlined_call_operand.hbm [shape: f32[2,128], index: 3, kind: output, shape index: {}]
  %s4 = sld [smem:[#allocation0]]
  $region30: #{policy_network_forward.1} parent=0
    _
  %s6 = ssub.s32 1, %s4
  %s7 = scalar_select 0, %s6, %s4
  $region1: #{policy_network_forward.1} parent=0
    #allocation2 [shape = 'u8[4096]{0}', space=vmem, size = 0x1000, scoped, tag = 'input window, operand 0, single buffered']
    #allocation3 [shape = 's32[1]{0}', space=sflag, size = 0x4, scoped, tag = 'scoped memory for policy_network_forward.1']
    #allocation4 [shape = 's32[1]{0}', space=sflag, size = 0x4, scoped, tag = 'scoped memory for policy_network_forward.1']
    #allocation5 [shape = 'u8[2048]{0}', space=vmem, size = 0x800, scoped, tag = 'input window, operand 1, single buffered']
    #allocation6 [shape = 's32[1]{0}', space=sflag, size = 0x4, scoped, tag = 'scoped memory for policy_network_forward.1']
    #allocation7 [shape = 'u8[4096]{0}', space=vmem, size = 0x1000, scoped, tag = 'output window, operand 0, single buffered']
    %8 = vsyncpa [#allocation3], 0
    %9 = vsyncpa [#allocation6], 0
    %10 = vsyncpa [#allocation4], 0
    // Predicated region
    $region2: #{policy_network_forward.1} parent=1 // pred_check
      _
    $region3: #{policy_network_forward.1} parent=1 // pred_check_branch
      %12 = sbr.rel (0) target = $region5
    $region4: #{policy_network_forward.1} parent=1 // pred_region
      %s14 = ssub.s32 128, 32
      %15 = vsyncadd [#allocation3], %s14
      %s16 = sshll.u32 [#allocation2], 4
      %s17 = int_to_ptr.vmem [resolvable:$true] %s16
      %22 = dma.hbm_to_vmem [thread:$0]  %s0, 32, %s17, [#allocation3], 32, 32, 2
    $region5: #{policy_network_forward.1} parent=1 // pred_fallthru
      _
    // Predicated region
    $region6: #{policy_network_forward.1} parent=1 // pred_check
      _
    $region7: #{policy_network_forward.1} parent=1 // pred_check_branch
      %24 = sbr.rel (0) target = $region9
    $region8: #{policy_network_forward.1} parent=1 // pred_region
      %s26 = ssub.s32 64, 64
      %27 = vsyncadd [#allocation6], %s26
      %s29 = sshll.u32 [#allocation5], 4
      %s30 = int_to_ptr.vmem [resolvable:$true] %s29
      %32 = dma.hbm_to_vmem [thread:$0]  %s1, 64, %s30, [#allocation6]
    $region9: #{policy_network_forward.1} parent=1 // pred_fallthru
      _
    // Predicated region
    $region10: #{policy_network_forward.1} parent=1 // pred_check
      _
    $region11: #{policy_network_forward.1} parent=1 // pred_check_branch
      %34 = sbr.rel (0) target = $region13
    $region12: #{policy_network_forward.1} parent=1 // pred_region
      _
    $region13: #{policy_network_forward.1} parent=1 // pred_fallthru
      _
    // Predicated region
    $region14: #{policy_network_forward.1} parent=1 // pred_check
      _
    $region15: #{policy_network_forward.1} parent=1 // pred_check_branch
      %36 = sbr.rel (0) target = $region17
    $region16: #{policy_network_forward.1} parent=1 // pred_region
      %37 = dma.done [#allocation3], 128
    $region17: #{policy_network_forward.1} parent=1 // pred_fallthru
      _
    // Predicated region
    $region18: #{policy_network_forward.1} parent=1 // pred_check
      _
    $region19: #{policy_network_forward.1} parent=1 // pred_check_branch
      %39 = sbr.rel (0) target = $region21
    $region20: #{policy_network_forward.1} parent=1 // pred_region
      %40 = dma.done [#allocation6], 64
    $region21: #{policy_network_forward.1} parent=1 // pred_fallthru
      _
    %v41 = vld [vmem:[#allocation2] sm:$0xff]
    %v42 = vld [vmem:[#allocation5] sm:$0xf]
    %v43 = vld [vmem:[%s2] sm:$0x1]
    %v45 = vlaneseq
    %v46 = vshrl.u32 %v45, 7
    %v47 = vsub.s32 0, %v46
    %v48 = vrot.slane %v43, %v47
    %vm50 = vcmask 31744
    %v52 = vsel %vm50, %v41, 0
    %vm54 = vcmask 1043456
    %v56 = vsel %vm54, %v42, 0
    %58 = vmatprep.subr.mxu0 0.0
    %59 = vmatpush1.msra.mxu0 %v56
    %60 = vmatprep.subr.mxu0 0.0
    %61 = vmatpush1.msra.mxu0 0.0
    %62 = vmatprep.subr.mxu0 0.0
    %63 = vmatpush1.msra.mxu0 0.0
    %64 = vmatprep.subr.mxu0 0.0
    %65 = vmatpush1.msra.mxu0 0.0
    %66 = vmatprep.subr.mxu0 0.0
    %67 = vmatpush1.msra.mxu0 0.0
    %68 = vmatprep.subr.mxu0 0.0
    %69 = vmatpush1.msra.mxu0 0.0
    %70 = vmatprep.subr.mxu0 0.0
    %71 = vmatpush1.msra.mxu0 0.0
    %72 = vmatprep.subr.mxu0 0.0
    %73 = vmatpush1.msra.mxu0 0.0
    %74 = vmatprep.subr.mxu0 0.0
    %75 = vmatpush1.msra.mxu0 0.0
    %76 = vmatprep.subr.mxu0 0.0
    %77 = vmatpush1.msra.mxu0 0.0
    %78 = vmatprep.subr.mxu0 0.0
    %79 = vmatpush1.msra.mxu0 0.0
    %80 = vmatprep.subr.mxu0 0.0
    %81 = vmatpush1.msra.mxu0 0.0
    %82 = vmatprep.subr.mxu0 0.0
    %83 = vmatpush1.msra.mxu0 0.0
    %84 = vmatprep.subr.mxu0 0.0
    %85 = vmatpush1.msra.mxu0 0.0
    %86 = vmatprep.subr.mxu0 0.0
    %87 = vmatpush1.msra.mxu0 0.0
    %88 = vmatprep.subr.mxu0 0.0
    %89 = vmatpush1.msra.mxu0 0.0
    %90 = vmatprep.subr.mxu0 0.0
    %91 = vmatpush1.msra.mxu0 0.0
    %92 = vmatprep.subr.mxu0 0.0
    %93 = vmatpush1.msra.mxu0 0.0
    %94 = vmatprep.subr.mxu0 0.0
    %95 = vmatpush1.msra.mxu0 0.0
    %96 = vmatprep.subr.mxu0 0.0
    %97 = vmatpush1.msra.mxu0 0.0
    %98 = vmatprep.subr.mxu0 0.0
    %99 = vmatpush1.msra.mxu0 0.0
    %100 = vmatprep.subr.mxu0 0.0
    %101 = vmatpush1.msra.mxu0 0.0
    %102 = vmatprep.subr.mxu0 0.0
    %103 = vmatpush1.msra.mxu0 0.0
    %104 = vmatprep.subr.mxu0 0.0
    %105 = vmatpush1.msra.mxu0 0.0
    %106 = vmatprep.subr.mxu0 0.0
    %107 = vmatpush1.msra.mxu0 0.0
    %108 = vmatprep.subr.mxu0 0.0
    %109 = vmatpush1.msra.mxu0 0.0
    %110 = vmatprep.subr.mxu0 0.0
    %111 = vmatpush1.msra.mxu0 0.0
    %112 = vmatprep.subr.mxu0 0.0
    %113 = vmatpush1.msra.mxu0 0.0
    %114 = vmatprep.subr.mxu0 0.0
    %115 = vmatpush1.msra.mxu0 0.0
    %116 = vmatprep.subr.mxu0 0.0
    %117 = vmatpush1.msra.mxu0 0.0
    %118 = vmatprep.subr.mxu0 0.0
    %119 = vmatpush1.msra.mxu0 0.0
    %120 = vmatprep.subr.mxu0 0.0
    %121 = vmatpush1.msra.mxu0 0.0
    %122 = vmatprep.mubr.f32.mxu0 0.0
    %123 = vmatmul.mubr.f32.gmra.mrb[0].mxu0 %v52
    %v124 = vpop.f32.mrb[0].mxu0
    %v125 = vadd.f32 %v48, %v124
    %v126 = vpop.f32.mrb[0].mxu0
    %127 = vdwg.mxu0
    %128 = vmax.xlane.f32.xlu0 %v125
    %v129 = vpop.xlane.xlu0 %128
    %v130 = vsub.f32 %v125, %v129
    %v131 = vmul.f32 %v130, 1.442695
    %v132 = vpow.pop %v131
    %133 = vadd.xlane.f32.xlu0 %v132
    %v134 = vpop.xlane.xlu0 %133
    %v135 = vrcp.pop %v134
    %v136 = vmul.f32 1.0, %v135
    %v137 = vmul.f32 %v132, %v136
    %138 = vst [vmem:[#allocation7] sm:$0xff] %v137
    // Predicated region
    $region22: #{policy_network_forward.1} parent=1 // pred_check
      _
    $region23: #{policy_network_forward.1} parent=1 // pred_check_branch
      %140 = sbr.rel (0) target = $region25
    $region24: #{policy_network_forward.1} parent=1 // pred_region
      %s142 = ssub.s32 128, 32
      %143 = vsyncadd [#allocation4], %s142
      %s144 = sshll.u32 [#allocation7], 4
      %s145 = int_to_ptr.vmem [resolvable:$true] %s144
      %150 = dma.vmem_to_hbm [thread:$0]  %s145, 32, %s3, [#allocation4], 32, 32, 2
    $region25: #{policy_network_forward.1} parent=1 // pred_fallthru
      _
    // Predicated region
    $region26: #{policy_network_forward.1} parent=1 // pred_check
      _
    $region27: #{policy_network_forward.1} parent=1 // pred_check_branch
      %152 = sbr.rel (0) target = $region29
    $region28: #{policy_network_forward.1} parent=1 // pred_region
      %153 = dma.done [#allocation4], 128
    $region29: #{policy_network_forward.1} parent=1 // pred_fallthru
      _
    %154 = vsyncpa [#allocation3], 1
    %155 = vsyncpa [#allocation6], 1
    %156 = vsyncpa [#allocation4], 1

</llo_original>
